<compile_context>
chip_gen: v7x
topology: tpu7x:2x2x1
jax: 0.10.0
libtpu: 0.0.40
codegen_flags: <defaults>
</compile_context>

<pallas_src>
import functools

import jax
import jax.numpy as jnp
import numpy as np
from jax.experimental import pallas as pl
from jax.experimental.pallas import tpu as pltpu


def _sppf_kernel(x_ref, w1_ref, w2_ref, a1_ref, a2_ref, rc_ref, o_ref, *, H, W, K):
    """One grid step = one batch block; tensors are (B*channels, H*W), spatial on lanes."""
    PAD = K // 2
    HW = H * W
    R = w1_ref.shape[0]                       # B*C_ rows of the pooled tensor
    NEG = jnp.float32(-jnp.inf)

    # Per-lane row / column indices, broadcast once to the pooled-tensor shape
    # and shared by all three pools.  Masked taps are replaced by -inf with a
    # select (robust even if the input contained +inf / NaN).
    row = jnp.broadcast_to(rc_ref[0], (R, HW))     # lane // W   (int32)
    col = jnp.broadcast_to(rc_ref[1], (R, HW))     # lane %  W   (int32)
    offs = [d for d in range(-PAD, PAD + 1) if d != 0]

    def border_masks(idx, limit):
        # valid <=> 0 <= idx + d < limit   (only one side can fail per sign of d)
        return [(idx >= -d) if d < 0 else (idx < limit - d) for d in offs]

    hmask = border_masks(row, H)              # H-pass (row-offset) taps
    wmask = border_masks(col, W)              # W-pass (column-offset) taps

    def maxpool(v):
        """MaxPool2d(K, stride=1, pad=K//2) on v: (R, HW), separable H then W."""
        h = v                                                     # center tap
        for m, d in zip(hmask, offs):                             # row shifts
            t = pltpu.roll(v, shift=(-d * W) % HW, axis=1)
            h = jnp.maximum(h, jnp.where(m, t, NEG))
        out = h                                                   # center tap
        for m, d in zip(wmask, offs):                             # column shifts
            t = pltpu.roll(h, shift=(-d) % HW, axis=1)
            out = jnp.maximum(out, jnp.where(m, t, NEG))
        return out

    # ---- cv1: 1x1 conv == (block-diagonal) channel matmul + BN affine + SiLU
    y = jnp.dot(w1_ref[...], x_ref[...], preferred_element_type=jnp.float32)
    y = y * a1_ref[0] + a1_ref[1]
    y = y * jax.nn.sigmoid(y)                                     # y0 (R, HW)

    # ---- cv2 fused into the pool chain (channel concat == sum of 4 matmuls),
    #      so only one pooled tensor is live at a time.
    z = jnp.dot(w2_ref[0], y, preferred_element_type=jnp.float32)
    y = maxpool(y)                                                # y1
    z += jnp.dot(w2_ref[1], y, preferred_element_type=jnp.float32)
    y = maxpool(y)                                                # y2
    z += jnp.dot(w2_ref[2], y, preferred_element_type=jnp.float32)
    y = maxpool(y)                                                # y3
    z += jnp.dot(w2_ref[3], y, preferred_element_type=jnp.float32)

    z = z * a2_ref[0] + a2_ref[1]
    z = z * jax.nn.sigmoid(z)                                     # SiLU
    o_ref[...] = z                                                # lane-dense store


def sppf_forward(x_nchw, w1, s1, b1, w2, s2, b2, k=5, batch_block=None):
    """x_nchw: (N, C1, H, W) f32; w1: (C_, C1); w2: (C2, 4*C_). Returns (N, C2, H, W)."""
    N, C1, H, W = x_nchw.shape
    Cm = w1.shape[0]
    C2 = w2.shape[0]
    assert w2.shape[1] == 4 * Cm
    HW = H * W
    # TODO(synk): real SPPF spatial sizes (e.g. 20x20 -> HW=400) should be padded
    #             up to a multiple of 128 lanes in the wrapper and the tail masked.
    assert HW % 128 == 0, "demo path assumes a lane-dense H*W"
    B = N if batch_block is None else batch_block
    assert N % B == 0

    # Flat views: free row-major reshapes, no transposes anywhere.
    x_flat = x_nchw.reshape(N * C1, HW)

    # Block-diagonal weights let one dot handle B images packed on sublane rows.
    # TODO(synk): for real channel counts / large B use batch_block=1 (or per-image
    #             dots) to avoid the O(B^2) zero blocks, and add a bf16 cast of
    #             x / w1 / w2 for v6e/v7x MXU rate (f32 kept here for parity).
    eye_b = jnp.eye(B, dtype=jnp.float32)
    w1_bd = jnp.kron(eye_b, w1)                                       # (B*Cm, B*C1)
    w2_bd = jnp.stack([jnp.kron(eye_b, w2[:, i * Cm:(i + 1) * Cm])
                       for i in range(4)])                            # (4, B*C2, B*Cm)
    a1 = jnp.stack([jnp.tile(s1, B), jnp.tile(b1, B)]).reshape(2, B * Cm, 1)
    a2 = jnp.stack([jnp.tile(s2, B), jnp.tile(b2, B)]).reshape(2, B * C2, 1)

    lanes = np.arange(HW, dtype=np.int64)
    rowcol = jnp.asarray(
        np.stack([lanes // W, lanes % W]).astype(np.int32).reshape(2, 1, HW))

    def full_spec(shape):
        return pl.BlockSpec(shape, lambda g: (0,) * len(shape))

    # Per-step VMEM footprint (double-buffered x/out blocks, resident weights,
    # live pool values / masks / accumulators), capped for v7x's 64 MiB VMEM.
    est = 4 * (2 * B * C1 * HW + 2 * B * C2 * HW
               + B * Cm * B * C1 + 4 * B * C2 * B * Cm
               + 2 * (B * Cm + B * C2) + 2 * HW
               + 10 * B * Cm * HW + 2 * B * C2 * HW)
    vmem_limit = int(min(48 * 2 ** 20, max(2 * est, 16 * 2 ** 20)))

    out_flat = pl.pallas_call(
        functools.partial(_sppf_kernel, H=H, W=W, K=k),
        out_shape=jax.ShapeDtypeStruct((N * C2, HW), jnp.float32),
        grid=(N // B,),
        in_specs=[
            pl.BlockSpec((B * C1, HW), lambda g: (g, 0)),             # x rows
            full_spec((B * Cm, B * C1)),                              # cv1 weight
            full_spec((4, B * C2, B * Cm)),                           # cv2 weights
            full_spec((2, B * Cm, 1)),                                # cv1 scale/bias
            full_spec((2, B * C2, 1)),                                # cv2 scale/bias
            full_spec((2, 1, HW)),                                    # lane row/col
        ],
        out_specs=pl.BlockSpec((B * C2, HW), lambda g: (g, 0)),
        compiler_params=pltpu.CompilerParams(
            dimension_semantics=("parallel",),                        # batch blocks
            vmem_limit_bytes=vmem_limit),
    )(x_flat, w1_bd, w2_bd, a1, a2, rowcol)

    return out_flat.reshape(N, C2, H, W)


def sppf_reference(x, w1, s1, b1, w2, s2, b2, k=5):
    """Pure-JAX NCHW reference for validation."""
    def pw(v, w, s, b):
        y = jnp.einsum('oc,nchw->nohw', w, v, precision=jax.lax.Precision.HIGHEST)
        y = y * s[None, :, None, None] + b[None, :, None, None]
        return y * jax.nn.sigmoid(y)

    def mp(v):
        p = k // 2
        return jax.lax.reduce_window(
            v, -jnp.inf, jax.lax.max,
            window_dimensions=(1, 1, k, k), window_strides=(1, 1, 1, 1),
            padding=[(0, 0), (0, 0), (p, p), (p, p)])

    y0 = pw(x, w1, s1, b1)
    y1 = mp(y0)
    y2 = mp(y1)
    y3 = mp(y2)
    cat = jnp.concatenate([y0, y1, y2, y3], axis=1)
    return pw(cat, w2, s2, b2)


def _fold_bn(gamma, beta, mean, var, eps=1e-3):
    scale = gamma / jnp.sqrt(var + eps)
    bias = beta - mean * scale
    return scale, bias


if __name__ == "__main__":
    # Module config: SPPF(c1=4, c2=8, k=5)  ->  c_ = c1 // 2 = 2
    c1, c2, k = 4, 8, 5
    c_ = c1 // 2
    N, H, W = 2, 16, 16

    key = jax.random.PRNGKey(0)
    ks = jax.random.split(key, 11)

    # cv1: Conv2d(c1, c_, 1) weight stored as (c_out, c_in) + folded BN params
    w1 = jax.random.normal(ks[0], (c_, c1), jnp.float32) * 0.5
    g1 = jax.random.uniform(ks[1], (c_,), jnp.float32, 0.5, 1.5)
    be1 = jax.random.normal(ks[2], (c_,), jnp.float32) * 0.1
    mu1 = jax.random.normal(ks[3], (c_,), jnp.float32) * 0.1
    var1 = jax.random.uniform(ks[4], (c_,), jnp.float32, 0.5, 1.5)
    s1, b1 = _fold_bn(g1, be1, mu1, var1)

    # cv2: Conv2d(4*c_, c2, 1) weight stored as (c_out, 4*c_) + folded BN params
    w2 = jax.random.normal(ks[5], (c2, 4 * c_), jnp.float32) * 0.5
    g2 = jax.random.uniform(ks[6], (c2,), jnp.float32, 0.5, 1.5)
    be2 = jax.random.normal(ks[7], (c2,), jnp.float32) * 0.1
    mu2 = jax.random.normal(ks[8], (c2,), jnp.float32) * 0.1
    var2 = jax.random.uniform(ks[9], (c2,), jnp.float32, 0.5, 1.5)
    s2, b2 = _fold_bn(g2, be2, mu2, var2)

    x = jax.random.normal(ks[10], (N, c1, H, W), jnp.float32)

    out = sppf_forward(x, w1, s1, b1, w2, s2, b2, k=k)
    out = jax.block_until_ready(out)

    ref = sppf_reference(x, w1, s1, b1, w2, s2, b2, k=k)
    assert out.shape == (N, c2, H, W), out.shape
    assert jnp.allclose(out, ref, rtol=1e-4, atol=1e-4), (
        float(jnp.max(jnp.abs(out - ref))))

    print("KERNEL_OK")
</pallas_src>

<mosaic_0001>
module attributes {stable_mosaic.version = 11 : i64} {
  func.func @_sppf_kernel(%arg0: i32, %arg1: memref<8x256xf32, #tpu.memory_space<vmem>>, %arg2: memref<4x8xf32, #tpu.memory_space<vmem>>, %arg3: memref<4x16x4xf32, #tpu.memory_space<vmem>>, %arg4: memref<2x4x1xf32, #tpu.memory_space<vmem>>, %arg5: memref<2x16x1xf32, #tpu.memory_space<vmem>>, %arg6: memref<2x1x256xi32, #tpu.memory_space<vmem>>, %arg7: memref<16x256xf32, #tpu.memory_space<vmem>>) attributes {dimension_semantics = [#tpu.dimension_semantics<parallel>], iteration_bounds = array<i64: 1>, scalar_prefetch = 0 : i64, scratch_operands = 0 : i64, tpu.core_type = #tpu.core_type<tc>, window_params = [{transform_indices = @transform_0, window_bounds = array<i64: 8, 256>}, {pipeline_mode = #tpu.pipeline_mode<synchronous>, transform_indices = @transform_1, window_bounds = array<i64: 4, 8>}, {pipeline_mode = #tpu.pipeline_mode<synchronous>, transform_indices = @transform_2, window_bounds = array<i64: 4, 16, 4>}, {pipeline_mode = #tpu.pipeline_mode<synchronous>, transform_indices = @transform_3, window_bounds = array<i64: 2, 4, 1>}, {pipeline_mode = #tpu.pipeline_mode<synchronous>, transform_indices = @transform_4, window_bounds = array<i64: 2, 16, 1>}, {pipeline_mode = #tpu.pipeline_mode<synchronous>, transform_indices = @transform_5, window_bounds = array<i64: 2, 1, 256>}, {transform_indices = @transform_6, window_bounds = array<i64: 16, 256>}]} {
    %c0 = arith.constant 0 : index
    %c0_0 = arith.constant 0 : index
    %c0_1 = arith.constant 0 : index
    %0 = vector.load %arg6[%c0, %c0_0, %c0_1] : memref<2x1x256xi32, #tpu.memory_space<vmem>>, vector<1x1x256xi32>
    %1 = vector.shape_cast %0 : vector<1x1x256xi32> to vector<1x256xi32>
    %2 = vector.shape_cast %1 : vector<1x256xi32> to vector<1x256xi32>
    %3 = vector.broadcast %2 : vector<1x256xi32> to vector<4x256xi32>
    %c1 = arith.constant 1 : index
    %c0_2 = arith.constant 0 : index
    %c0_3 = arith.constant 0 : index
    %4 = vector.load %arg6[%c1, %c0_2, %c0_3] : memref<2x1x256xi32, #tpu.memory_space<vmem>>, vector<1x1x256xi32>
    %5 = vector.shape_cast %4 : vector<1x1x256xi32> to vector<1x256xi32>
    %6 = vector.shape_cast %5 : vector<1x256xi32> to vector<1x256xi32>
    %7 = vector.broadcast %6 : vector<1x256xi32> to vector<4x256xi32>
    %c2_i32 = arith.constant 2 : i32
    %8 = vector.broadcast %c2_i32 : i32 to vector<4x256xi32>
    %9 = arith.cmpi sge, %3, %8 : vector<4x256xi32>
    %c1_i32 = arith.constant 1 : i32
    %10 = vector.broadcast %c1_i32 : i32 to vector<4x256xi32>
    %11 = arith.cmpi sge, %3, %10 : vector<4x256xi32>
    %c15_i32 = arith.constant 15 : i32
    %12 = vector.broadcast %c15_i32 : i32 to vector<4x256xi32>
    %13 = arith.cmpi slt, %3, %12 : vector<4x256xi32>
    %c14_i32 = arith.constant 14 : i32
    %14 = vector.broadcast %c14_i32 : i32 to vector<4x256xi32>
    %15 = arith.cmpi slt, %3, %14 : vector<4x256xi32>
    %c2_i32_4 = arith.constant 2 : i32
    %16 = vector.broadcast %c2_i32_4 : i32 to vector<4x256xi32>
    %17 = arith.cmpi sge, %7, %16 : vector<4x256xi32>
    %c1_i32_5 = arith.constant 1 : i32
    %18 = vector.broadcast %c1_i32_5 : i32 to vector<4x256xi32>
    %19 = arith.cmpi sge, %7, %18 : vector<4x256xi32>
    %c15_i32_6 = arith.constant 15 : i32
    %20 = vector.broadcast %c15_i32_6 : i32 to vector<4x256xi32>
    %21 = arith.cmpi slt, %7, %20 : vector<4x256xi32>
    %c14_i32_7 = arith.constant 14 : i32
    %22 = vector.broadcast %c14_i32_7 : i32 to vector<4x256xi32>
    %23 = arith.cmpi slt, %7, %22 : vector<4x256xi32>
    %c0_8 = arith.constant 0 : index
    %c0_9 = arith.constant 0 : index
    %24 = vector.load %arg2[%c0_8, %c0_9] : memref<4x8xf32, #tpu.memory_space<vmem>>, vector<4x8xf32>
    %c0_10 = arith.constant 0 : index
    %c0_11 = arith.constant 0 : index
    %25 = vector.load %arg1[%c0_10, %c0_11] : memref<8x256xf32, #tpu.memory_space<vmem>>, vector<8x256xf32>
    %cst = arith.constant dense<0.000000e+00> : vector<4x256xf32>
    %26 = tpu.matmul %24, %25, %cst {dimension_numbers = #tpu.dot_dimension_numbers<[1], [0], [0], [1], [0, 0, 1, 1], [], []>} : vector<4x8xf32>, vector<8x256xf32>, vector<4x256xf32> -> vector<4x256xf32>
    %c0_12 = arith.constant 0 : index
    %c0_13 = arith.constant 0 : index
    %c0_14 = arith.constant 0 : index
    %27 = vector.load %arg4[%c0_12, %c0_13, %c0_14] : memref<2x4x1xf32, #tpu.memory_space<vmem>>, vector<1x4x1xf32>
    %28 = vector.shape_cast %27 : vector<1x4x1xf32> to vector<4x1xf32>
    %29 = vector.broadcast %28 : vector<4x1xf32> to vector<4x256xf32>
    %30 = arith.mulf %26, %29 : vector<4x256xf32>
    %c1_15 = arith.constant 1 : index
    %c0_16 = arith.constant 0 : index
    %c0_17 = arith.constant 0 : index
    %31 = vector.load %arg4[%c1_15, %c0_16, %c0_17] : memref<2x4x1xf32, #tpu.memory_space<vmem>>, vector<1x4x1xf32>
    %32 = vector.shape_cast %31 : vector<1x4x1xf32> to vector<4x1xf32>
    %33 = vector.broadcast %32 : vector<4x1xf32> to vector<4x256xf32>
    %34 = arith.addf %30, %33 : vector<4x256xf32>
    %35 = arith.negf %34 : vector<4x256xf32>
    %36 = math.exp %35 : vector<4x256xf32>
    %cst_18 = arith.constant 1.000000e+00 : f32
    %37 = vector.broadcast %cst_18 : f32 to vector<4x256xf32>
    %38 = arith.addf %37, %36 : vector<4x256xf32>
    %39 = arith.divf %37, %38 : vector<4x256xf32>
    %40 = arith.mulf %34, %39 : vector<4x256xf32>
    %c0_19 = arith.constant 0 : index
    %c0_20 = arith.constant 0 : index
    %c0_21 = arith.constant 0 : index
    %41 = vector.load %arg3[%c0_19, %c0_20, %c0_21] : memref<4x16x4xf32, #tpu.memory_space<vmem>>, vector<1x16x4xf32>
    %42 = vector.shape_cast %41 : vector<1x16x4xf32> to vector<16x4xf32>
    %cst_22 = arith.constant dense<0.000000e+00> : vector<16x256xf32>
    %43 = tpu.matmul %42, %40, %cst_22 {dimension_numbers = #tpu.dot_dimension_numbers<[1], [0], [0], [1], [0, 0, 1, 1], [], []>} : vector<16x4xf32>, vector<4x256xf32>, vector<16x256xf32> -> vector<16x256xf32>
    %c32_i32 = arith.constant 32 : i32
    %44 = tpu.dynamic_rotate %40 by %c32_i32 dim 1 : vector<4x256xf32>, i32 -> vector<4x256xf32>
    %cst_23 = arith.constant 0xFF800000 : f32
    %45 = vector.broadcast %cst_23 : f32 to vector<4x256xf32>
    %46 = arith.select %9, %44, %45 : vector<4x256xi1>, vector<4x256xf32>
    %47 = arith.maximumf %40, %46 : vector<4x256xf32>
    %c16_i32 = arith.constant 16 : i32
    %48 = tpu.dynamic_rotate %40 by %c16_i32 dim 1 : vector<4x256xf32>, i32 -> vector<4x256xf32>
    %cst_24 = arith.constant 0xFF800000 : f32
    %49 = vector.broadcast %cst_24 : f32 to vector<4x256xf32>
    %50 = arith.select %11, %48, %49 : vector<4x256xi1>, vector<4x256xf32>
    %51 = arith.maximumf %47, %50 : vector<4x256xf32>
    %c240_i32 = arith.constant 240 : i32
    %52 = tpu.dynamic_rotate %40 by %c240_i32 dim 1 : vector<4x256xf32>, i32 -> vector<4x256xf32>
    %cst_25 = arith.constant 0xFF800000 : f32
    %53 = vector.broadcast %cst_25 : f32 to vector<4x256xf32>
    %54 = arith.select %13, %52, %53 : vector<4x256xi1>, vector<4x256xf32>
    %55 = arith.maximumf %51, %54 : vector<4x256xf32>
    %c224_i32 = arith.constant 224 : i32
    %56 = tpu.dynamic_rotate %40 by %c224_i32 dim 1 : vector<4x256xf32>, i32 -> vector<4x256xf32>
    %cst_26 = arith.constant 0xFF800000 : f32
    %57 = vector.broadcast %cst_26 : f32 to vector<4x256xf32>
    %58 = arith.select %15, %56, %57 : vector<4x256xi1>, vector<4x256xf32>
    %59 = arith.maximumf %55, %58 : vector<4x256xf32>
    %c2_i32_27 = arith.constant 2 : i32
    %60 = tpu.dynamic_rotate %59 by %c2_i32_27 dim 1 : vector<4x256xf32>, i32 -> vector<4x256xf32>
    %cst_28 = arith.constant 0xFF800000 : f32
    %61 = vector.broadcast %cst_28 : f32 to vector<4x256xf32>
    %62 = arith.select %17, %60, %61 : vector<4x256xi1>, vector<4x256xf32>
    %63 = arith.maximumf %59, %62 : vector<4x256xf32>
    %c1_i32_29 = arith.constant 1 : i32
    %64 = tpu.dynamic_rotate %59 by %c1_i32_29 dim 1 : vector<4x256xf32>, i32 -> vector<4x256xf32>
    %cst_30 = arith.constant 0xFF800000 : f32
    %65 = vector.broadcast %cst_30 : f32 to vector<4x256xf32>
    %66 = arith.select %19, %64, %65 : vector<4x256xi1>, vector<4x256xf32>
    %67 = arith.maximumf %63, %66 : vector<4x256xf32>
    %c255_i32 = arith.constant 255 : i32
    %68 = tpu.dynamic_rotate %59 by %c255_i32 dim 1 : vector<4x256xf32>, i32 -> vector<4x256xf32>
    %cst_31 = arith.constant 0xFF800000 : f32
    %69 = vector.broadcast %cst_31 : f32 to vector<4x256xf32>
    %70 = arith.select %21, %68, %69 : vector<4x256xi1>, vector<4x256xf32>
    %71 = arith.maximumf %67, %70 : vector<4x256xf32>
    %c254_i32 = arith.constant 254 : i32
    %72 = tpu.dynamic_rotate %59 by %c254_i32 dim 1 : vector<4x256xf32>, i32 -> vector<4x256xf32>
    %cst_32 = arith.constant 0xFF800000 : f32
    %73 = vector.broadcast %cst_32 : f32 to vector<4x256xf32>
    %74 = arith.select %23, %72, %73 : vector<4x256xi1>, vector<4x256xf32>
    %75 = arith.maximumf %71, %74 : vector<4x256xf32>
    %c1_33 = arith.constant 1 : index
    %c0_34 = arith.constant 0 : index
    %c0_35 = arith.constant 0 : index
    %76 = vector.load %arg3[%c1_33, %c0_34, %c0_35] : memref<4x16x4xf32, #tpu.memory_space<vmem>>, vector<1x16x4xf32>
    %77 = vector.shape_cast %76 : vector<1x16x4xf32> to vector<16x4xf32>
    %cst_36 = arith.constant dense<0.000000e+00> : vector<16x256xf32>
    %78 = tpu.matmul %77, %75, %cst_36 {dimension_numbers = #tpu.dot_dimension_numbers<[1], [0], [0], [1], [0, 0, 1, 1], [], []>} : vector<16x4xf32>, vector<4x256xf32>, vector<16x256xf32> -> vector<16x256xf32>
    %79 = arith.addf %43, %78 : vector<16x256xf32>
    %c32_i32_37 = arith.constant 32 : i32
    %80 = tpu.dynamic_rotate %75 by %c32_i32_37 dim 1 : vector<4x256xf32>, i32 -> vector<4x256xf32>
    %cst_38 = arith.constant 0xFF800000 : f32
    %81 = vector.broadcast %cst_38 : f32 to vector<4x256xf32>
    %82 = arith.select %9, %80, %81 : vector<4x256xi1>, vector<4x256xf32>
    %83 = arith.maximumf %75, %82 : vector<4x256xf32>
    %c16_i32_39 = arith.constant 16 : i32
    %84 = tpu.dynamic_rotate %75 by %c16_i32_39 dim 1 : vector<4x256xf32>, i32 -> vector<4x256xf32>
    %cst_40 = arith.constant 0xFF800000 : f32
    %85 = vector.broadcast %cst_40 : f32 to vector<4x256xf32>
    %86 = arith.select %11, %84, %85 : vector<4x256xi1>, vector<4x256xf32>
    %87 = arith.maximumf %83, %86 : vector<4x256xf32>
    %c240_i32_41 = arith.constant 240 : i32
    %88 = tpu.dynamic_rotate %75 by %c240_i32_41 dim 1 : vector<4x256xf32>, i32 -> vector<4x256xf32>
    %cst_42 = arith.constant 0xFF800000 : f32
    %89 = vector.broadcast %cst_42 : f32 to vector<4x256xf32>
    %90 = arith.select %13, %88, %89 : vector<4x256xi1>, vector<4x256xf32>
    %91 = arith.maximumf %87, %90 : vector<4x256xf32>
    %c224_i32_43 = arith.constant 224 : i32
    %92 = tpu.dynamic_rotate %75 by %c224_i32_43 dim 1 : vector<4x256xf32>, i32 -> vector<4x256xf32>
    %cst_44 = arith.constant 0xFF800000 : f32
    %93 = vector.broadcast %cst_44 : f32 to vector<4x256xf32>
    %94 = arith.select %15, %92, %93 : vector<4x256xi1>, vector<4x256xf32>
    %95 = arith.maximumf %91, %94 : vector<4x256xf32>
    %c2_i32_45 = arith.constant 2 : i32
    %96 = tpu.dynamic_rotate %95 by %c2_i32_45 dim 1 : vector<4x256xf32>, i32 -> vector<4x256xf32>
    %cst_46 = arith.constant 0xFF800000 : f32
    %97 = vector.broadcast %cst_46 : f32 to vector<4x256xf32>
    %98 = arith.select %17, %96, %97 : vector<4x256xi1>, vector<4x256xf32>
    %99 = arith.maximumf %95, %98 : vector<4x256xf32>
    %c1_i32_47 = arith.constant 1 : i32
    %100 = tpu.dynamic_rotate %95 by %c1_i32_47 dim 1 : vector<4x256xf32>, i32 -> vector<4x256xf32>
    %cst_48 = arith.constant 0xFF800000 : f32
    %101 = vector.broadcast %cst_48 : f32 to vector<4x256xf32>
    %102 = arith.select %19, %100, %101 : vector<4x256xi1>, vector<4x256xf32>
    %103 = arith.maximumf %99, %102 : vector<4x256xf32>
    %c255_i32_49 = arith.constant 255 : i32
    %104 = tpu.dynamic_rotate %95 by %c255_i32_49 dim 1 : vector<4x256xf32>, i32 -> vector<4x256xf32>
    %cst_50 = arith.constant 0xFF800000 : f32
    %105 = vector.broadcast %cst_50 : f32 to vector<4x256xf32>
    %106 = arith.select %21, %104, %105 : vector<4x256xi1>, vector<4x256xf32>
    %107 = arith.maximumf %103, %106 : vector<4x256xf32>
    %c254_i32_51 = arith.constant 254 : i32
    %108 = tpu.dynamic_rotate %95 by %c254_i32_51 dim 1 : vector<4x256xf32>, i32 -> vector<4x256xf32>
    %cst_52 = arith.constant 0xFF800000 : f32
    %109 = vector.broadcast %cst_52 : f32 to vector<4x256xf32>
    %110 = arith.select %23, %108, %109 : vector<4x256xi1>, vector<4x256xf32>
    %111 = arith.maximumf %107, %110 : vector<4x256xf32>
    %c2 = arith.constant 2 : index
    %c0_53 = arith.constant 0 : index
    %c0_54 = arith.constant 0 : index
    %112 = vector.load %arg3[%c2, %c0_53, %c0_54] : memref<4x16x4xf32, #tpu.memory_space<vmem>>, vector<1x16x4xf32>
    %113 = vector.shape_cast %112 : vector<1x16x4xf32> to vector<16x4xf32>
    %cst_55 = arith.constant dense<0.000000e+00> : vector<16x256xf32>
    %114 = tpu.matmul %113, %111, %cst_55 {dimension_numbers = #tpu.dot_dimension_numbers<[1], [0], [0], [1], [0, 0, 1, 1], [], []>} : vector<16x4xf32>, vector<4x256xf32>, vector<16x256xf32> -> vector<16x256xf32>
    %115 = arith.addf %79, %114 : vector<16x256xf32>
    %c32_i32_56 = arith.constant 32 : i32
    %116 = tpu.dynamic_rotate %111 by %c32_i32_56 dim 1 : vector<4x256xf32>, i32 -> vector<4x256xf32>
    %cst_57 = arith.constant 0xFF800000 : f32
    %117 = vector.broadcast %cst_57 : f32 to vector<4x256xf32>
    %118 = arith.select %9, %116, %117 : vector<4x256xi1>, vector<4x256xf32>
    %119 = arith.maximumf %111, %118 : vector<4x256xf32>
    %c16_i32_58 = arith.constant 16 : i32
    %120 = tpu.dynamic_rotate %111 by %c16_i32_58 dim 1 : vector<4x256xf32>, i32 -> vector<4x256xf32>
    %cst_59 = arith.constant 0xFF800000 : f32
    %121 = vector.broadcast %cst_59 : f32 to vector<4x256xf32>
    %122 = arith.select %11, %120, %121 : vector<4x256xi1>, vector<4x256xf32>
    %123 = arith.maximumf %119, %122 : vector<4x256xf32>
    %c240_i32_60 = arith.constant 240 : i32
    %124 = tpu.dynamic_rotate %111 by %c240_i32_60 dim 1 : vector<4x256xf32>, i32 -> vector<4x256xf32>
    %cst_61 = arith.constant 0xFF800000 : f32
    %125 = vector.broadcast %cst_61 : f32 to vector<4x256xf32>
    %126 = arith.select %13, %124, %125 : vector<4x256xi1>, vector<4x256xf32>
    %127 = arith.maximumf %123, %126 : vector<4x256xf32>
    %c224_i32_62 = arith.constant 224 : i32
    %128 = tpu.dynamic_rotate %111 by %c224_i32_62 dim 1 : vector<4x256xf32>, i32 -> vector<4x256xf32>
    %cst_63 = arith.constant 0xFF800000 : f32
    %129 = vector.broadcast %cst_63 : f32 to vector<4x256xf32>
    %130 = arith.select %15, %128, %129 : vector<4x256xi1>, vector<4x256xf32>
    %131 = arith.maximumf %127, %130 : vector<4x256xf32>
    %c2_i32_64 = arith.constant 2 : i32
    %132 = tpu.dynamic_rotate %131 by %c2_i32_64 dim 1 : vector<4x256xf32>, i32 -> vector<4x256xf32>
    %cst_65 = arith.constant 0xFF800000 : f32
    %133 = vector.broadcast %cst_65 : f32 to vector<4x256xf32>
    %134 = arith.select %17, %132, %133 : vector<4x256xi1>, vector<4x256xf32>
    %135 = arith.maximumf %131, %134 : vector<4x256xf32>
    %c1_i32_66 = arith.constant 1 : i32
    %136 = tpu.dynamic_rotate %131 by %c1_i32_66 dim 1 : vector<4x256xf32>, i32 -> vector<4x256xf32>
    %cst_67 = arith.constant 0xFF800000 : f32
    %137 = vector.broadcast %cst_67 : f32 to vector<4x256xf32>
    %138 = arith.select %19, %136, %137 : vector<4x256xi1>, vector<4x256xf32>
    %139 = arith.maximumf %135, %138 : vector<4x256xf32>
    %c255_i32_68 = arith.constant 255 : i32
    %140 = tpu.dynamic_rotate %131 by %c255_i32_68 dim 1 : vector<4x256xf32>, i32 -> vector<4x256xf32>
    %cst_69 = arith.constant 0xFF800000 : f32
    %141 = vector.broadcast %cst_69 : f32 to vector<4x256xf32>
    %142 = arith.select %21, %140, %141 : vector<4x256xi1>, vector<4x256xf32>
    %143 = arith.maximumf %139, %142 : vector<4x256xf32>
    %c254_i32_70 = arith.constant 254 : i32
    %144 = tpu.dynamic_rotate %131 by %c254_i32_70 dim 1 : vector<4x256xf32>, i32 -> vector<4x256xf32>
    %cst_71 = arith.constant 0xFF800000 : f32
    %145 = vector.broadcast %cst_71 : f32 to vector<4x256xf32>
    %146 = arith.select %23, %144, %145 : vector<4x256xi1>, vector<4x256xf32>
    %147 = arith.maximumf %143, %146 : vector<4x256xf32>
    %c3 = arith.constant 3 : index
    %c0_72 = arith.constant 0 : index
    %c0_73 = arith.constant 0 : index
    %148 = vector.load %arg3[%c3, %c0_72, %c0_73] : memref<4x16x4xf32, #tpu.memory_space<vmem>>, vector<1x16x4xf32>
    %149 = vector.shape_cast %148 : vector<1x16x4xf32> to vector<16x4xf32>
    %cst_74 = arith.constant dense<0.000000e+00> : vector<16x256xf32>
    %150 = tpu.matmul %149, %147, %cst_74 {dimension_numbers = #tpu.dot_dimension_numbers<[1], [0], [0], [1], [0, 0, 1, 1], [], []>} : vector<16x4xf32>, vector<4x256xf32>, vector<16x256xf32> -> vector<16x256xf32>
    %151 = arith.addf %115, %150 : vector<16x256xf32>
    %c0_75 = arith.constant 0 : index
    %c0_76 = arith.constant 0 : index
    %c0_77 = arith.constant 0 : index
    %152 = vector.load %arg5[%c0_75, %c0_76, %c0_77] : memref<2x16x1xf32, #tpu.memory_space<vmem>>, vector<1x16x1xf32>
    %153 = vector.shape_cast %152 : vector<1x16x1xf32> to vector<16x1xf32>
    %154 = vector.broadcast %153 : vector<16x1xf32> to vector<16x256xf32>
    %155 = arith.mulf %151, %154 : vector<16x256xf32>
    %c1_78 = arith.constant 1 : index
    %c0_79 = arith.constant 0 : index
    %c0_80 = arith.constant 0 : index
    %156 = vector.load %arg5[%c1_78, %c0_79, %c0_80] : memref<2x16x1xf32, #tpu.memory_space<vmem>>, vector<1x16x1xf32>
    %157 = vector.shape_cast %156 : vector<1x16x1xf32> to vector<16x1xf32>
    %158 = vector.broadcast %157 : vector<16x1xf32> to vector<16x256xf32>
    %159 = arith.addf %155, %158 : vector<16x256xf32>
    %160 = arith.negf %159 : vector<16x256xf32>
    %161 = math.exp %160 : vector<16x256xf32>
    %cst_81 = arith.constant 1.000000e+00 : f32
    %162 = vector.broadcast %cst_81 : f32 to vector<16x256xf32>
    %163 = arith.addf %162, %161 : vector<16x256xf32>
    %164 = arith.divf %162, %163 : vector<16x256xf32>
    %165 = arith.mulf %159, %164 : vector<16x256xf32>
    %c0_82 = arith.constant 0 : index
    %c0_83 = arith.constant 0 : index
    %166 = vector.load %arg7[%c0_82, %c0_83] : memref<16x256xf32, #tpu.memory_space<vmem>>, vector<16x256xf32>
    tpu.vector_store %arg7[%c0_82, %c0_83], %165 {strides = array<i32>} : memref<16x256xf32, #tpu.memory_space<vmem>>, vector<16x256xf32>,
    return
  }
  func.func @transform_0(%arg0: i32) -> (i32, i32) {
    %c0_i32 = arith.constant 0 : i32
    %c0_i32_0 = arith.constant 0 : i32
    return %arg0, %c0_i32 : i32, i32
  }
  func.func @transform_1(%arg0: i32) -> (i32, i32) {
    %c0_i32 = arith.constant 0 : i32
    %c0_i32_0 = arith.constant 0 : i32
    %c0_i32_1 = arith.constant 0 : i32
    return %c0_i32, %c0_i32_0 : i32, i32
  }
  func.func @transform_2(%arg0: i32) -> (i32, i32, i32) {
    %c0_i32 = arith.constant 0 : i32
    %c0_i32_0 = arith.constant 0 : i32
    %c0_i32_1 = arith.constant 0 : i32
    %c0_i32_2 = arith.constant 0 : i32
    return %c0_i32, %c0_i32_0, %c0_i32_1 : i32, i32, i32
  }
  func.func @transform_3(%arg0: i32) -> (i32, i32, i32) {
    %c0_i32 = arith.constant 0 : i32
    %c0_i32_0 = arith.constant 0 : i32
    %c0_i32_1 = arith.constant 0 : i32
    %c0_i32_2 = arith.constant 0 : i32
    return %c0_i32, %c0_i32_0, %c0_i32_1 : i32, i32, i32
  }
  func.func @transform_4(%arg0: i32) -> (i32, i32, i32) {
    %c0_i32 = arith.constant 0 : i32
    %c0_i32_0 = arith.constant 0 : i32
    %c0_i32_1 = arith.constant 0 : i32
    %c0_i32_2 = arith.constant 0 : i32
    return %c0_i32, %c0_i32_0, %c0_i32_1 : i32, i32, i32
  }
  func.func @transform_5(%arg0: i32) -> (i32, i32, i32) {
    %c0_i32 = arith.constant 0 : i32
    %c0_i32_0 = arith.constant 0 : i32
    %c0_i32_1 = arith.constant 0 : i32
    %c0_i32_2 = arith.constant 0 : i32
    return %c0_i32, %c0_i32_0, %c0_i32_1 : i32, i32, i32
  }
  func.func @transform_6(%arg0: i32) -> (i32, i32) {
    %c0_i32 = arith.constant 0 : i32
    %c0_i32_0 = arith.constant 0 : i32
    return %arg0, %c0_i32 : i32, i32
  }
}

</mosaic_0001>

<llo_original>
// kernel: tpu_custom_call.1
$region0: #{tpu_custom_call.1}
  #allocation0 [shape = 'u32[]', space=smem, size = 0x4, offset = 0x4, fixed_abs, tag = 'smem constant byte address 0x4 - core index']
  #allocation1 [shape = 'u32[144,128]{1,0:T(1,128)}', space=vmem, size = 0x12000, scoped, tag = 'internal scratch']
  %s0 = inlined_call_operand.vmem [shape: f32[8,256], index: 0, kind: input, shape index: {}]
  %s1 = inlined_call_operand.vmem [shape: f32[4,8], index: 1, kind: input, shape index: {}]
  %s2 = inlined_call_operand.vmem [shape: f32[4,16,4], index: 2, kind: input, shape index: {}]
  %s3 = inlined_call_operand.vmem [shape: f32[2,4,1], index: 3, kind: input, shape index: {}]
  %s4 = inlined_call_operand.vmem [shape: f32[2,16,1], index: 4, kind: input, shape index: {}]
  %s5 = inlined_call_operand.vmem [shape: s32[2,1,256], index: 5, kind: input, shape index: {}]
  %s6 = inlined_call_operand.hbm [shape: f32[16,256], index: 6, kind: output, shape index: {}]
  %s7 = sld [smem:[#allocation0]]
  $region34: #{tpu_custom_call.1} parent=0
    _
  %s9 = ssub.s32 1, %s7
  %s10 = scalar_select 0, %s9, %s7
  $region1: #{tpu_custom_call.1} parent=0
    #allocation2 [shape = 'u8[16384]{0}', space=vmem, size = 0x4000, scoped, tag = 'output window, operand 0, single buffered']
    #allocation3 [shape = 's32[1]{0}', space=sflag, size = 0x4, scoped, tag = 'scoped memory for tpu_custom_call.1']
    %11 = vsyncpa [#allocation3], 0
    // Predicated region
    $region2: #{tpu_custom_call.1} parent=1 // pred_check
      _
    $region3: #{tpu_custom_call.1} parent=1 // pred_check_branch
      %13 = sbr.rel (0) target = $region5
    $region4: #{tpu_custom_call.1} parent=1 // pred_region
      _
    $region5: #{tpu_custom_call.1} parent=1 // pred_fallthru
      _
    // Predicated region
    $region6: #{tpu_custom_call.1} parent=1 // pred_check
      _
    $region7: #{tpu_custom_call.1} parent=1 // pred_check_branch
      %15 = sbr.rel (0) target = $region9
    $region8: #{tpu_custom_call.1} parent=1 // pred_region
      _
    $region9: #{tpu_custom_call.1} parent=1 // pred_fallthru
      _
    // Predicated region
    $region10: #{tpu_custom_call.1} parent=1 // pred_check
      _
    $region11: #{tpu_custom_call.1} parent=1 // pred_check_branch
      %17 = sbr.rel (0) target = $region13
    $region12: #{tpu_custom_call.1} parent=1 // pred_region
      _
    $region13: #{tpu_custom_call.1} parent=1 // pred_fallthru
      _
    // Predicated region
    $region14: #{tpu_custom_call.1} parent=1 // pred_check
      _
    $region15: #{tpu_custom_call.1} parent=1 // pred_check_branch
      %19 = sbr.rel (0) target = $region17
    $region16: #{tpu_custom_call.1} parent=1 // pred_region
      _
    $region17: #{tpu_custom_call.1} parent=1 // pred_fallthru
      _
    // Predicated region
    $region18: #{tpu_custom_call.1} parent=1 // pred_check
      _
    $region19: #{tpu_custom_call.1} parent=1 // pred_check_branch
      %21 = sbr.rel (0) target = $region21
    $region20: #{tpu_custom_call.1} parent=1 // pred_region
      _
    $region21: #{tpu_custom_call.1} parent=1 // pred_fallthru
      _
    // Predicated region
    $region22: #{tpu_custom_call.1} parent=1 // pred_check
      _
    $region23: #{tpu_custom_call.1} parent=1 // pred_check_branch
      %23 = sbr.rel (0) target = $region25
    $region24: #{tpu_custom_call.1} parent=1 // pred_region
      _
    $region25: #{tpu_custom_call.1} parent=1 // pred_fallthru
      _
    %v24 = vld [vmem:[%s5] sm:$0x3]
    %v25 = vlaneseq
    %v26 = vshrl.u32 %v25, 7
    %v27 = vsub.s32 0, %v26
    %v28 = vrot.slane %v24, %v27
    %v29 = vlaneseq
    %v30 = vshrl.u32 %v29, 7
    %v31 = vsub.s32 1, %v30
    %v32 = vrot.slane %v24, %v31
    %s33 = scalar_lea.vmem %s5, 2
    %v34 = vld [vmem:[%s33] sm:$0x3]
    %v35 = vlaneseq
    %v36 = vshrl.u32 %v35, 7
    %v37 = vsub.s32 0, %v36
    %v38 = vrot.slane %v34, %v37
    %v39 = vlaneseq
    %v40 = vshrl.u32 %v39, 7
    %v41 = vsub.s32 1, %v40
    %v42 = vrot.slane %v34, %v41
    %vm43 = vcmp.ge.s32.totalorder %v28, 2
    %vm44 = vcmp.ge.s32.totalorder %v32, 2
    %vm45 = vcmp.ge.s32.totalorder %v28, 1
    %vm46 = vcmp.ge.s32.totalorder %v32, 1
    %vm47 = vcmp.lt.s32.totalorder %v28, 15
    %vm48 = vcmp.lt.s32.totalorder %v32, 15
    %vm49 = vcmp.lt.s32.totalorder %v28, 14
    %vm50 = vcmp.lt.s32.totalorder %v32, 14
    %vm51 = vcmp.ge.s32.totalorder %v38, 2
    %vm52 = vcmp.ge.s32.totalorder %v42, 2
    %vm53 = vcmp.ge.s32.totalorder %v38, 1
    %vm54 = vcmp.ge.s32.totalorder %v42, 1
    %vm55 = vcmp.lt.s32.totalorder %v38, 15
    %vm56 = vcmp.lt.s32.totalorder %v42, 15
    %vm57 = vcmp.lt.s32.totalorder %v38, 14
    %vm58 = vcmp.lt.s32.totalorder %v42, 14
    %v59 = vld [vmem:[%s1] sm:$0xf]
    %v60 = vld [vmem:[%s0] sm:$0xff]
    %v61 = vld [vmem:[%s0 + $0x8] sm:$0xff]
    %vm62 = vcmask 64512
    %v64 = vsel %vm62, %v59, 0
    %66 = vmatprep.subr.mxu0 %v61
    %67 = vmatpush1.msra.mxu0 %v60
    %68 = vmatprep.subr.mxu0 0.0
    %69 = vmatpush1.msra.mxu0 0.0
    %70 = vmatprep.subr.mxu0 0.0
    %71 = vmatpush1.msra.mxu0 0.0
    %72 = vmatprep.subr.mxu0 0.0
    %73 = vmatpush1.msra.mxu0 0.0
    %74 = vmatprep.subr.mxu0 0.0
    %75 = vmatpush1.msra.mxu0 0.0
    %76 = vmatprep.subr.mxu0 0.0
    %77 = vmatpush1.msra.mxu0 0.0
    %78 = vmatprep.subr.mxu0 0.0
    %79 = vmatpush1.msra.mxu0 0.0
    %80 = vmatprep.subr.mxu0 0.0
    %81 = vmatpush1.msra.mxu0 0.0
    %82 = vmatprep.subr.mxu0 0.0
    %83 = vmatpush1.msra.mxu0 0.0
    %84 = vmatprep.subr.mxu0 0.0
    %85 = vmatpush1.msra.mxu0 0.0
    %86 = vmatprep.subr.mxu0 0.0
    %87 = vmatpush1.msra.mxu0 0.0
    %88 = vmatprep.subr.mxu0 0.0
    %89 = vmatpush1.msra.mxu0 0.0
    %90 = vmatprep.subr.mxu0 0.0
    %91 = vmatpush1.msra.mxu0 0.0
    %92 = vmatprep.subr.mxu0 0.0
    %93 = vmatpush1.msra.mxu0 0.0
    %94 = vmatprep.subr.mxu0 0.0
    %95 = vmatpush1.msra.mxu0 0.0
    %96 = vmatprep.subr.mxu0 0.0
    %97 = vmatpush1.msra.mxu0 0.0
    %98 = vmatprep.subr.mxu0 0.0
    %99 = vmatpush1.msra.mxu0 0.0
    %100 = vmatprep.subr.mxu0 0.0
    %101 = vmatpush1.msra.mxu0 0.0
    %102 = vmatprep.subr.mxu0 0.0
    %103 = vmatpush1.msra.mxu0 0.0
    %104 = vmatprep.subr.mxu0 0.0
    %105 = vmatpush1.msra.mxu0 0.0
    %106 = vmatprep.subr.mxu0 0.0
    %107 = vmatpush1.msra.mxu0 0.0
    %108 = vmatprep.subr.mxu0 0.0
    %109 = vmatpush1.msra.mxu0 0.0
    %110 = vmatprep.subr.mxu0 0.0
    %111 = vmatpush1.msra.mxu0 0.0
    %112 = vmatprep.subr.mxu0 0.0
    %113 = vmatpush1.msra.mxu0 0.0
    %114 = vmatprep.subr.mxu0 0.0
    %115 = vmatpush1.msra.mxu0 0.0
    %116 = vmatprep.subr.mxu0 0.0
    %117 = vmatpush1.msra.mxu0 0.0
    %118 = vmatprep.subr.mxu0 0.0
    %119 = vmatpush1.msra.mxu0 0.0
    %120 = vmatprep.subr.mxu0 0.0
    %121 = vmatpush1.msra.mxu0 0.0
    %122 = vmatprep.subr.mxu0 0.0
    %123 = vmatpush1.msra.mxu0 0.0
    %124 = vmatprep.subr.mxu0 0.0
    %125 = vmatpush1.msra.mxu0 0.0
    %126 = vmatprep.subr.mxu0 0.0
    %127 = vmatpush1.msra.mxu0 0.0
    %128 = vmatprep.subr.mxu0 0.0
    %129 = vmatpush1.msra.mxu0 0.0
    %130 = vmatprep.mubr.f32.mxu0 0.0
    %131 = vmatmul.mubr.f32.gmra.mrb[0].mxu0 %v64
    %v132 = vpop.f32.mrb[0].mxu0
    %v133 = vadd.f32 0.0, %v132
    %v134 = vpop.f32.mrb[0].mxu0
    %v135 = vadd.f32 0.0, %v134
    %136 = vdwg.mxu0
    %v137 = vld [vmem:[%s3] sm:$0xf]
    %139 = vset.pattern.permute.xlu0 0
    %140 = vperm.xlu0 %139, %v137
    %v141 = vpop.permute.xlu0 %140
    %v143 = vmul.f32 %v133, %v141
    %v144 = vmul.f32 %v135, %v141
    %s145 = scalar_lea.vmem %s3, 4
    %v146 = vld [vmem:[%s145] sm:$0xf]
    %148 = vset.pattern.permute.xlu0 0
    %149 = vperm.xlu0 %148, %v146
    %v150 = vpop.permute.xlu0 %149
    %v152 = vadd.f32 %v143, %v150
    %v153 = vadd.f32 %v144, %v150
    %v154 = vxor.u32 %v152, 2147483648
    %v155 = vxor.u32 %v153, 2147483648
    %v156 = vmul.f32 %v154, 1.442695
    %v157 = vpow.pop %v156
    %v158 = vmul.f32 %v155, 1.442695
    %v159 = vpow.pop %v158
    %v160 = vadd.f32 %v157, 1.0
    %v161 = vadd.f32 %v159, 1.0
    %v162 = vrcp.pop %v160
    %v163 = vmul.f32 1.0, %v162
    %v164 = vrcp.pop %v161
    %v165 = vmul.f32 1.0, %v164
    %v166 = vmul.f32 %v152, %v163
    %v167 = vmul.f32 %v153, %v165
    %v168 = vld [vmem:[%s2] sm:$0xff]
    %v169 = vld [vmem:[%s2 + $0x8] sm:$0xff]
    %170 = vrot.lane.b32.xlu0 %v166, 32
    %v171 = vpop.permute.xlu0 %170
    %172 = vrot.lane.b32.xlu0 %v167, 32
    %v173 = vpop.permute.xlu0 %172
    %v174 = vlaneseq
    %v175 = vand.u32 %v174, 127
    %vm176 = vcmp.lt.s32.totalorder %v175, 32
    %v177 = vsel %vm176, %v171, %v173
    %v178 = vsel %vm176, %v173, %v171
    %v179 = vsel %vm43, %v178, -inf
    %v180 = vsel %vm44, %v177, -inf
    %v181 = vmax.f32 %v166, %v179
    %v182 = vmax.f32 %v167, %v180
    %183 = vrot.lane.b32.xlu0 %v166, 16
    %v184 = vpop.permute.xlu0 %183
    %185 = vrot.lane.b32.xlu0 %v167, 16
    %v186 = vpop.permute.xlu0 %185
    %vm187 = vcmp.lt.s32.totalorder %v175, 16
    %v188 = vsel %vm187, %v184, %v186
    %v189 = vsel %vm187, %v186, %v184
    %v190 = vsel %vm45, %v189, -inf
    %v191 = vsel %vm46, %v188, -inf
    %v192 = vmax.f32 %v181, %v190
    %v193 = vmax.f32 %v182, %v191
    %194 = vrot.lane.b32.xlu0 %v166, 112
    %v195 = vpop.permute.xlu0 %194
    %196 = vrot.lane.b32.xlu0 %v167, 112
    %v197 = vpop.permute.xlu0 %196
    %vm198 = vcmp.lt.s32.totalorder %v175, 112
    %v199 = vsel %vm198, %v195, %v197
    %v200 = vsel %vm198, %v197, %v195
    %v201 = vsel %vm47, %v199, -inf
    %v202 = vsel %vm48, %v200, -inf
    %v203 = vmax.f32 %v192, %v201
    %v204 = vmax.f32 %v193, %v202
    %205 = vrot.lane.b32.xlu0 %v166, 96
    %v206 = vpop.permute.xlu0 %205
    %207 = vrot.lane.b32.xlu0 %v167, 96
    %v208 = vpop.permute.xlu0 %207
    %vm209 = vcmp.lt.s32.totalorder %v175, 96
    %v210 = vsel %vm209, %v206, %v208
    %v211 = vsel %vm209, %v208, %v206
    %v212 = vsel %vm49, %v210, -inf
    %v213 = vsel %vm50, %v211, -inf
    %v214 = vmax.f32 %v203, %v212
    %v215 = vmax.f32 %v204, %v213
    %216 = vrot.lane.b32.xlu0 %v214, 2
    %v217 = vpop.permute.xlu0 %216
    %218 = vrot.lane.b32.xlu0 %v215, 2
    %v219 = vpop.permute.xlu0 %218
    %vm220 = vcmp.lt.s32.totalorder %v175, 2
    %v221 = vsel %vm220, %v217, %v219
    %v222 = vsel %vm220, %v219, %v217
    %v223 = vsel %vm51, %v222, -inf
    %v224 = vsel %vm52, %v221, -inf
    %v225 = vmax.f32 %v214, %v223
    %v226 = vmax.f32 %v215, %v224
    %227 = vrot.lane.b32.xlu0 %v214, 1
    %v228 = vpop.permute.xlu0 %227
    %229 = vrot.lane.b32.xlu0 %v215, 1
    %v230 = vpop.permute.xlu0 %229
    %vm231 = vcmp.lt.s32.totalorder %v175, 1
    %v232 = vsel %vm231, %v228, %v230
    %v233 = vsel %vm231, %v230, %v228
    %v234 = vsel %vm53, %v233, -inf
    %v235 = vsel %vm54, %v232, -inf
    %v236 = vmax.f32 %v225, %v234
    %v237 = vmax.f32 %v226, %v235
    %238 = vrot.lane.b32.xlu0 %v214, 127
    %v239 = vpop.permute.xlu0 %238
    %240 = vrot.lane.b32.xlu0 %v215, 127
    %v241 = vpop.permute.xlu0 %240
    %vm242 = vcmp.lt.s32.totalorder %v175, 127
    %v243 = vsel %vm242, %v239, %v241
    %v244 = vsel %vm242, %v241, %v239
    %v245 = vsel %vm55, %v243, -inf
    %v246 = vsel %vm56, %v244, -inf
    %v247 = vmax.f32 %v236, %v245
    %v248 = vmax.f32 %v237, %v246
    %249 = vrot.lane.b32.xlu0 %v214, 126
    %v250 = vpop.permute.xlu0 %249
    %251 = vrot.lane.b32.xlu0 %v215, 126
    %v252 = vpop.permute.xlu0 %251
    %vm253 = vcmp.lt.s32.totalorder %v175, 126
    %v254 = vsel %vm253, %v250, %v252
    %v255 = vsel %vm253, %v252, %v250
    %v256 = vsel %vm57, %v254, -inf
    %v257 = vsel %vm58, %v255, -inf
    %v258 = vmax.f32 %v247, %v256
    %v259 = vmax.f32 %v248, %v257
    %s260 = scalar_lea.vmem %s2, 16
    %v261 = vld [vmem:[%s260] sm:$0xff]
    %v262 = vld [vmem:[%s260 + $0x8] sm:$0xff]
    %vm263 = vcmask 31744
    %v265 = vsel %vm263, %v261, 0
    %v268 = vsel %vm263, %v262, 0
    %vm270 = vcmask 1043456
    %v272 = vsel %vm270, %v258, 0
    %v275 = vsel %vm270, %v259, 0
    %277 = vmatprep.subr.mxu0 %v275
    %278 = vmatpush1.msra.mxu0 %v272
    %279 = vmatprep.subr.mxu0 0.0
    %280 = vmatpush1.msra.mxu0 0.0
    %281 = vmatprep.subr.mxu0 0.0
    %282 = vmatpush1.msra.mxu0 0.0
    %283 = vmatprep.subr.mxu0 0.0
    %284 = vmatpush1.msra.mxu0 0.0
    %285 = vmatprep.subr.mxu0 0.0
    %286 = vmatpush1.msra.mxu0 0.0
    %287 = vmatprep.subr.mxu0 0.0
    %288 = vmatpush1.msra.mxu0 0.0
    %289 = vmatprep.subr.mxu0 0.0
    %290 = vmatpush1.msra.mxu0 0.0
    %291 = vmatprep.subr.mxu0 0.0
    %292 = vmatpush1.msra.mxu0 0.0
    %293 = vmatprep.subr.mxu0 0.0
    %294 = vmatpush1.msra.mxu0 0.0
    %295 = vmatprep.subr.mxu0 0.0
    %296 = vmatpush1.msra.mxu0 0.0
    %297 = vmatprep.subr.mxu0 0.0
    %298 = vmatpush1.msra.mxu0 0.0
    %299 = vmatprep.subr.mxu0 0.0
    %300 = vmatpush1.msra.mxu0 0.0
    %301 = vmatprep.subr.mxu0 0.0
    %302 = vmatpush1.msra.mxu0 0.0
    %303 = vmatprep.subr.mxu0 0.0
    %304 = vmatpush1.msra.mxu0 0.0
    %305 = vmatprep.subr.mxu0 0.0
    %306 = vmatpush1.msra.mxu0 0.0
    %307 = vmatprep.subr.mxu0 0.0
    %308 = vmatpush1.msra.mxu0 0.0
    %309 = vmatprep.subr.mxu0 0.0
    %310 = vmatpush1.msra.mxu0 0.0
    %311 = vmatprep.subr.mxu0 0.0
    %312 = vmatpush1.msra.mxu0 0.0
    %313 = vmatprep.subr.mxu0 0.0
    %314 = vmatpush1.msra.mxu0 0.0
    %315 = vmatprep.subr.mxu0 0.0
    %316 = vmatpush1.msra.mxu0 0.0
    %317 = vmatprep.subr.mxu0 0.0
    %318 = vmatpush1.msra.mxu0 0.0
    %319 = vmatprep.subr.mxu0 0.0
    %320 = vmatpush1.msra.mxu0 0.0
    %321 = vmatprep.subr.mxu0 0.0
    %322 = vmatpush1.msra.mxu0 0.0
    %323 = vmatprep.subr.mxu0 0.0
    %324 = vmatpush1.msra.mxu0 0.0
    %325 = vmatprep.subr.mxu0 0.0
    %326 = vmatpush1.msra.mxu0 0.0
    %327 = vmatprep.subr.mxu0 0.0
    %328 = vmatpush1.msra.mxu0 0.0
    %329 = vmatprep.subr.mxu0 0.0
    %330 = vmatpush1.msra.mxu0 0.0
    %331 = vmatprep.subr.mxu0 0.0
    %332 = vmatpush1.msra.mxu0 0.0
    %333 = vmatprep.subr.mxu0 0.0
    %334 = vmatpush1.msra.mxu0 0.0
    %335 = vmatprep.subr.mxu0 0.0
    %336 = vmatpush1.msra.mxu0 0.0
    %337 = vmatprep.subr.mxu0 0.0
    %338 = vmatpush1.msra.mxu0 0.0
    %339 = vmatprep.subr.mxu0 0.0
    %340 = vmatpush1.msra.mxu0 0.0
    %341 = vmatprep.mubr.f32.mxu0 0.0
    %342 = vmatmul.mubr.f32.gmra.mrb[0].mxu0 %v265
    %v343 = vpop.f32.mrb[0].mxu0
    %v344 = vadd.f32 0.0, %v343
    %v345 = vpop.f32.mrb[0].mxu0
    %v346 = vadd.f32 0.0, %v345
    %347 = vmatprep.mubr.f32.mxu0 0.0
    %348 = vmatmul.mubr.f32.gmra.mrb[0].mxu0 %v268
    %v349 = vpop.f32.mrb[0].mxu0
    %v350 = vadd.f32 0.0, %v349
    %v351 = vpop.f32.mrb[0].mxu0
    %v352 = vadd.f32 0.0, %v351
    %353 = vdwg.mxu0
    %v355 = vsel %vm263, %v168, 0
    %v358 = vsel %vm263, %v169, 0
    %v361 = vsel %vm270, %v166, 0
    %v364 = vsel %vm270, %v167, 0
    %366 = vmatprep.subr.mxu0 %v364
    %367 = vmatpush1.msra.mxu0 %v361
    %368 = vmatprep.subr.mxu0 0.0
    %369 = vmatpush1.msra.mxu0 0.0
    %370 = vmatprep.subr.mxu0 0.0
    %371 = vmatpush1.msra.mxu0 0.0
    %372 = vmatprep.subr.mxu0 0.0
    %373 = vmatpush1.msra.mxu0 0.0
    %374 = vmatprep.subr.mxu0 0.0
    %375 = vmatpush1.msra.mxu0 0.0
    %376 = vmatprep.subr.mxu0 0.0
    %377 = vmatpush1.msra.mxu0 0.0
    %378 = vmatprep.subr.mxu0 0.0
    %379 = vmatpush1.msra.mxu0 0.0
    %380 = vmatprep.subr.mxu0 0.0
    %381 = vmatpush1.msra.mxu0 0.0
    %382 = vmatprep.subr.mxu0 0.0
    %383 = vmatpush1.msra.mxu0 0.0
    %384 = vmatprep.subr.mxu0 0.0
    %385 = vmatpush1.msra.mxu0 0.0
    %386 = vmatprep.subr.mxu0 0.0
    %387 = vmatpush1.msra.mxu0 0.0
    %388 = vmatprep.subr.mxu0 0.0
    %389 = vmatpush1.msra.mxu0 0.0
    %390 = vmatprep.subr.mxu0 0.0
    %391 = vmatpush1.msra.mxu0 0.0
    %392 = vmatprep.subr.mxu0 0.0
    %393 = vmatpush1.msra.mxu0 0.0
    %394 = vmatprep.subr.mxu0 0.0
    %395 = vmatpush1.msra.mxu0 0.0
    %396 = vmatprep.subr.mxu0 0.0
    %397 = vmatpush1.msra.mxu0 0.0
    %398 = vmatprep.subr.mxu0 0.0
    %399 = vmatpush1.msra.mxu0 0.0
    %400 = vmatprep.subr.mxu0 0.0
    %401 = vmatpush1.msra.mxu0 0.0
    %402 = vmatprep.subr.mxu0 0.0
    %403 = vmatpush1.msra.mxu0 0.0
    %404 = vmatprep.subr.mxu0 0.0
    %405 = vmatpush1.msra.mxu0 0.0
    %406 = vmatprep.subr.mxu0 0.0
    %407 = vmatpush1.msra.mxu0 0.0
    %408 = vmatprep.subr.mxu0 0.0
    %409 = vmatpush1.msra.mxu0 0.0
    %410 = vmatprep.subr.mxu0 0.0
    %411 = vmatpush1.msra.mxu0 0.0
    %412 = vmatprep.subr.mxu0 0.0
    %413 = vmatpush1.msra.mxu0 0.0
    %414 = vmatprep.subr.mxu0 0.0
    %415 = vmatpush1.msra.mxu0 0.0
    %416 = vmatprep.subr.mxu0 0.0
    %417 = vmatpush1.msra.mxu0 0.0
    %418 = vmatprep.subr.mxu0 0.0
    %419 = vmatpush1.msra.mxu0 0.0
    %420 = vmatprep.subr.mxu0 0.0
    %421 = vmatpush1.msra.mxu0 0.0
    %422 = vmatprep.subr.mxu0 0.0
    %423 = vmatpush1.msra.mxu0 0.0
    %424 = vmatprep.subr.mxu0 0.0
    %425 = vmatpush1.msra.mxu0 0.0
    %426 = vmatprep.subr.mxu0 0.0
    %427 = vmatpush1.msra.mxu0 0.0
    %428 = vmatprep.subr.mxu0 0.0
    %429 = vmatpush1.msra.mxu0 0.0
    %430 = vmatprep.mubr.f32.mxu0 0.0
    %431 = vmatmul.mubr.f32.gmra.mrb[0].mxu0 %v355
    %v432 = vpop.f32.mrb[0].mxu0
    %v433 = vadd.f32 %v344, %v432
    %v434 = vpop.f32.mrb[0].mxu0
    %v435 = vadd.f32 %v346, %v434
    %436 = vmatprep.mubr.f32.mxu0 0.0
    %437 = vmatmul.mubr.f32.gmra.mrb[0].mxu0 %v358
    %v438 = vpop.f32.mrb[0].mxu0
    %v439 = vadd.f32 %v350, %v438
    %v440 = vpop.f32.mrb[0].mxu0
    %v441 = vadd.f32 %v352, %v440
    %442 = vdwg.mxu0
    %443 = vrot.lane.b32.xlu0 %v258, 32
    %v444 = vpop.permute.xlu0 %443
    %445 = vrot.lane.b32.xlu0 %v259, 32
    %v446 = vpop.permute.xlu0 %445
    %v447 = vsel %vm176, %v444, %v446
    %v448 = vsel %vm176, %v446, %v444
    %v449 = vsel %vm43, %v448, -inf
    %v450 = vsel %vm44, %v447, -inf
    %v451 = vmax.f32 %v258, %v449
    %v452 = vmax.f32 %v259, %v450
    %453 = vrot.lane.b32.xlu0 %v258, 16
    %v454 = vpop.permute.xlu0 %453
    %455 = vrot.lane.b32.xlu0 %v259, 16
    %v456 = vpop.permute.xlu0 %455
    %v457 = vsel %vm187, %v454, %v456
    %v458 = vsel %vm187, %v456, %v454
    %v459 = vsel %vm45, %v458, -inf
    %v460 = vsel %vm46, %v457, -inf
    %v461 = vmax.f32 %v451, %v459
    %v462 = vmax.f32 %v452, %v460
    %463 = vrot.lane.b32.xlu0 %v258, 112
    %v464 = vpop.permute.xlu0 %463
    %465 = vrot.lane.b32.xlu0 %v259, 112
    %v466 = vpop.permute.xlu0 %465
    %v467 = vsel %vm198, %v464, %v466
    %v468 = vsel %vm198, %v466, %v464
    %v469 = vsel %vm47, %v467, -inf
    %v470 = vsel %vm48, %v468, -inf
    %v471 = vmax.f32 %v461, %v469
    %v472 = vmax.f32 %v462, %v470
    %473 = vrot.lane.b32.xlu0 %v258, 96
    %v474 = vpop.permute.xlu0 %473
    %475 = vrot.lane.b32.xlu0 %v259, 96
    %v476 = vpop.permute.xlu0 %475
    %v477 = vsel %vm209, %v474, %v476
    %v478 = vsel %vm209, %v476, %v474
    %v479 = vsel %vm49, %v477, -inf
    %v480 = vsel %vm50, %v478, -inf
    %v481 = vmax.f32 %v471, %v479
    %v482 = vmax.f32 %v472, %v480
    %483 = vrot.lane.b32.xlu0 %v481, 2
    %v484 = vpop.permute.xlu0 %483
    %485 = vrot.lane.b32.xlu0 %v482, 2
    %v486 = vpop.permute.xlu0 %485
    %v487 = vsel %vm220, %v484, %v486
    %v488 = vsel %vm220, %v486, %v484
    %v489 = vsel %vm51, %v488, -inf
    %v490 = vsel %vm52, %v487, -inf
    %v491 = vmax.f32 %v481, %v489
    %v492 = vmax.f32 %v482, %v490
    %493 = vrot.lane.b32.xlu0 %v481, 1
    %v494 = vpop.permute.xlu0 %493
    %495 = vrot.lane.b32.xlu0 %v482, 1
    %v496 = vpop.permute.xlu0 %495
    %v497 = vsel %vm231, %v494, %v496
    %v498 = vsel %vm231, %v496, %v494
    %v499 = vsel %vm53, %v498, -inf
    %v500 = vsel %vm54, %v497, -inf
    %v501 = vmax.f32 %v491, %v499
    %v502 = vmax.f32 %v492, %v500
    %503 = vrot.lane.b32.xlu0 %v481, 127
    %v504 = vpop.permute.xlu0 %503
    %505 = vrot.lane.b32.xlu0 %v482, 127
    %v506 = vpop.permute.xlu0 %505
    %v507 = vsel %vm242, %v504, %v506
    %v508 = vsel %vm242, %v506, %v504
    %v509 = vsel %vm55, %v507, -inf
    %v510 = vsel %vm56, %v508, -inf
    %v511 = vmax.f32 %v501, %v509
    %v512 = vmax.f32 %v502, %v510
    %513 = vrot.lane.b32.xlu0 %v481, 126
    %v514 = vpop.permute.xlu0 %513
    %515 = vrot.lane.b32.xlu0 %v482, 126
    %v516 = vpop.permute.xlu0 %515
    %v517 = vsel %vm253, %v514, %v516
    %v518 = vsel %vm253, %v516, %v514
    %v519 = vsel %vm57, %v517, -inf
    %v520 = vsel %vm58, %v518, -inf
    %v521 = vmax.f32 %v511, %v519
    %v522 = vmax.f32 %v512, %v520
    %s523 = scalar_lea.vmem %s2, 32
    %v524 = vld [vmem:[%s523] sm:$0xff]
    %v525 = vld [vmem:[%s523 + $0x8] sm:$0xff]
    %v527 = vsel %vm263, %v524, 0
    %v530 = vsel %vm263, %v525, 0
    %v533 = vsel %vm270, %v521, 0
    %v536 = vsel %vm270, %v522, 0
    %538 = vmatprep.subr.mxu0 %v536
    %539 = vmatpush1.msra.mxu0 %v533
    %540 = vmatprep.subr.mxu0 0.0
    %541 = vmatpush1.msra.mxu0 0.0
    %542 = vmatprep.subr.mxu0 0.0
    %543 = vmatpush1.msra.mxu0 0.0
    %544 = vmatprep.subr.mxu0 0.0
    %545 = vmatpush1.msra.mxu0 0.0
    %546 = vmatprep.subr.mxu0 0.0
    %547 = vmatpush1.msra.mxu0 0.0
    %548 = vmatprep.subr.mxu0 0.0
    %549 = vmatpush1.msra.mxu0 0.0
    %550 = vmatprep.subr.mxu0 0.0
    %551 = vmatpush1.msra.mxu0 0.0
    %552 = vmatprep.subr.mxu0 0.0
    %553 = vmatpush1.msra.mxu0 0.0
    %554 = vmatprep.subr.mxu0 0.0
    %555 = vmatpush1.msra.mxu0 0.0
    %556 = vmatprep.subr.mxu0 0.0
    %557 = vmatpush1.msra.mxu0 0.0
    %558 = vmatprep.subr.mxu0 0.0
    %559 = vmatpush1.msra.mxu0 0.0
    %560 = vmatprep.subr.mxu0 0.0
    %561 = vmatpush1.msra.mxu0 0.0
    %562 = vmatprep.subr.mxu0 0.0
    %563 = vmatpush1.msra.mxu0 0.0
    %564 = vmatprep.subr.mxu0 0.0
    %565 = vmatpush1.msra.mxu0 0.0
    %566 = vmatprep.subr.mxu0 0.0
    %567 = vmatpush1.msra.mxu0 0.0
    %568 = vmatprep.subr.mxu0 0.0
    %569 = vmatpush1.msra.mxu0 0.0
    %570 = vmatprep.subr.mxu0 0.0
    %571 = vmatpush1.msra.mxu0 0.0
    %572 = vmatprep.subr.mxu0 0.0
    %573 = vmatpush1.msra.mxu0 0.0
    %574 = vmatprep.subr.mxu0 0.0
    %575 = vmatpush1.msra.mxu0 0.0
    %576 = vmatprep.subr.mxu0 0.0
    %577 = vmatpush1.msra.mxu0 0.0
    %578 = vmatprep.subr.mxu0 0.0
    %579 = vmatpush1.msra.mxu0 0.0
    %580 = vmatprep.subr.mxu0 0.0
    %581 = vmatpush1.msra.mxu0 0.0
    %582 = vmatprep.subr.mxu0 0.0
    %583 = vmatpush1.msra.mxu0 0.0
    %584 = vmatprep.subr.mxu0 0.0
    %585 = vmatpush1.msra.mxu0 0.0
    %586 = vmatprep.subr.mxu0 0.0
    %587 = vmatpush1.msra.mxu0 0.0
    %588 = vmatprep.subr.mxu0 0.0
    %589 = vmatpush1.msra.mxu0 0.0
    %590 = vmatprep.subr.mxu0 0.0
    %591 = vmatpush1.msra.mxu0 0.0
    %592 = vmatprep.subr.mxu0 0.0
    %593 = vmatpush1.msra.mxu0 0.0
    %594 = vmatprep.subr.mxu0 0.0
    %595 = vmatpush1.msra.mxu0 0.0
    %596 = vmatprep.subr.mxu0 0.0
    %597 = vmatpush1.msra.mxu0 0.0
    %598 = vmatprep.subr.mxu0 0.0
    %599 = vmatpush1.msra.mxu0 0.0
    %600 = vmatprep.subr.mxu0 0.0
    %601 = vmatpush1.msra.mxu0 0.0
    %602 = vmatprep.mubr.f32.mxu0 0.0
    %603 = vmatmul.mubr.f32.gmra.mrb[0].mxu0 %v527
    %v604 = vpop.f32.mrb[0].mxu0
    %v605 = vadd.f32 0.0, %v604
    %v606 = vpop.f32.mrb[0].mxu0
    %v607 = vadd.f32 0.0, %v606
    %608 = vmatprep.mubr.f32.mxu0 0.0
    %609 = vmatmul.mubr.f32.gmra.mrb[0].mxu0 %v530
    %v610 = vpop.f32.mrb[0].mxu0
    %v611 = vadd.f32 0.0, %v610
    %v612 = vpop.f32.mrb[0].mxu0
    %v613 = vadd.f32 0.0, %v612
    %614 = vdwg.mxu0
    %v615 = vadd.f32 %v433, %v605
    %v616 = vadd.f32 %v435, %v607
    %v617 = vadd.f32 %v439, %v611
    %v618 = vadd.f32 %v441, %v613
    %619 = vrot.lane.b32.xlu0 %v521, 32
    %v620 = vpop.permute.xlu0 %619
    %621 = vrot.lane.b32.xlu0 %v522, 32
    %v622 = vpop.permute.xlu0 %621
    %v623 = vsel %vm176, %v620, %v622
    %v624 = vsel %vm176, %v622, %v620
    %v625 = vsel %vm43, %v624, -inf
    %v626 = vsel %vm44, %v623, -inf
    %v627 = vmax.f32 %v521, %v625
    %v628 = vmax.f32 %v522, %v626
    %629 = vrot.lane.b32.xlu0 %v521, 16
    %v630 = vpop.permute.xlu0 %629
    %631 = vrot.lane.b32.xlu0 %v522, 16
    %v632 = vpop.permute.xlu0 %631
    %v633 = vsel %vm187, %v630, %v632
    %v634 = vsel %vm187, %v632, %v630
    %v635 = vsel %vm45, %v634, -inf
    %v636 = vsel %vm46, %v633, -inf
    %v637 = vmax.f32 %v627, %v635
    %v638 = vmax.f32 %v628, %v636
    %639 = vrot.lane.b32.xlu0 %v521, 112
    %v640 = vpop.permute.xlu0 %639
    %641 = vrot.lane.b32.xlu0 %v522, 112
    %v642 = vpop.permute.xlu0 %641
    %v643 = vsel %vm198, %v640, %v642
    %v644 = vsel %vm198, %v642, %v640
    %v645 = vsel %vm47, %v643, -inf
    %v646 = vsel %vm48, %v644, -inf
    %v647 = vmax.f32 %v637, %v645
    %v648 = vmax.f32 %v638, %v646
    %649 = vrot.lane.b32.xlu0 %v521, 96
    %v650 = vpop.permute.xlu0 %649
    %651 = vrot.lane.b32.xlu0 %v522, 96
    %v652 = vpop.permute.xlu0 %651
    %v653 = vsel %vm209, %v650, %v652
    %v654 = vsel %vm209, %v652, %v650
    %v655 = vsel %vm49, %v653, -inf
    %v656 = vsel %vm50, %v654, -inf
    %v657 = vmax.f32 %v647, %v655
    %v658 = vmax.f32 %v648, %v656
    %659 = vrot.lane.b32.xlu0 %v657, 2
    %v660 = vpop.permute.xlu0 %659
    %661 = vrot.lane.b32.xlu0 %v658, 2
    %v662 = vpop.permute.xlu0 %661
    %v663 = vsel %vm220, %v660, %v662
    %v664 = vsel %vm220, %v662, %v660
    %v665 = vsel %vm51, %v664, -inf
    %v666 = vsel %vm52, %v663, -inf
    %v667 = vmax.f32 %v657, %v665
    %v668 = vmax.f32 %v658, %v666
    %669 = vrot.lane.b32.xlu0 %v657, 1
    %v670 = vpop.permute.xlu0 %669
    %671 = vrot.lane.b32.xlu0 %v658, 1
    %v672 = vpop.permute.xlu0 %671
    %v673 = vsel %vm231, %v670, %v672
    %v674 = vsel %vm231, %v672, %v670
    %v675 = vsel %vm53, %v674, -inf
    %v676 = vsel %vm54, %v673, -inf
    %v677 = vmax.f32 %v667, %v675
    %v678 = vmax.f32 %v668, %v676
    %679 = vrot.lane.b32.xlu0 %v657, 127
    %v680 = vpop.permute.xlu0 %679
    %681 = vrot.lane.b32.xlu0 %v658, 127
    %v682 = vpop.permute.xlu0 %681
    %v683 = vsel %vm242, %v680, %v682
    %v684 = vsel %vm242, %v682, %v680
    %v685 = vsel %vm55, %v683, -inf
    %v686 = vsel %vm56, %v684, -inf
    %v687 = vmax.f32 %v677, %v685
    %v688 = vmax.f32 %v678, %v686
    %689 = vrot.lane.b32.xlu0 %v657, 126
    %v690 = vpop.permute.xlu0 %689
    %691 = vrot.lane.b32.xlu0 %v658, 126
    %v692 = vpop.permute.xlu0 %691
    %v693 = vsel %vm253, %v690, %v692
    %v694 = vsel %vm253, %v692, %v690
    %v695 = vsel %vm57, %v693, -inf
    %v696 = vsel %vm58, %v694, -inf
    %v697 = vmax.f32 %v687, %v695
    %v698 = vmax.f32 %v688, %v696
    %s699 = scalar_lea.vmem %s2, 48
    %v700 = vld [vmem:[%s699] sm:$0xff]
    %v701 = vld [vmem:[%s699 + $0x8] sm:$0xff]
    %v703 = vsel %vm263, %v700, 0
    %v706 = vsel %vm263, %v701, 0
    %v709 = vsel %vm270, %v697, 0
    %v712 = vsel %vm270, %v698, 0
    %714 = vmatprep.subr.mxu0 %v712
    %715 = vmatpush1.msra.mxu0 %v709
    %716 = vmatprep.subr.mxu0 0.0
    %717 = vmatpush1.msra.mxu0 0.0
    %718 = vmatprep.subr.mxu0 0.0
    %719 = vmatpush1.msra.mxu0 0.0
    %720 = vmatprep.subr.mxu0 0.0
    %721 = vmatpush1.msra.mxu0 0.0
    %722 = vmatprep.subr.mxu0 0.0
    %723 = vmatpush1.msra.mxu0 0.0
    %724 = vmatprep.subr.mxu0 0.0
    %725 = vmatpush1.msra.mxu0 0.0
    %726 = vmatprep.subr.mxu0 0.0
    %727 = vmatpush1.msra.mxu0 0.0
    %728 = vmatprep.subr.mxu0 0.0
    %729 = vmatpush1.msra.mxu0 0.0
    %730 = vmatprep.subr.mxu0 0.0
    %731 = vmatpush1.msra.mxu0 0.0
    %732 = vmatprep.subr.mxu0 0.0
    %733 = vmatpush1.msra.mxu0 0.0
    %734 = vmatprep.subr.mxu0 0.0
    %735 = vmatpush1.msra.mxu0 0.0
    %736 = vmatprep.subr.mxu0 0.0
    %737 = vmatpush1.msra.mxu0 0.0
    %738 = vmatprep.subr.mxu0 0.0
    %739 = vmatpush1.msra.mxu0 0.0
    %740 = vmatprep.subr.mxu0 0.0
    %741 = vmatpush1.msra.mxu0 0.0
    %742 = vmatprep.subr.mxu0 0.0
    %743 = vmatpush1.msra.mxu0 0.0
    %744 = vmatprep.subr.mxu0 0.0
    %745 = vmatpush1.msra.mxu0 0.0
    %746 = vmatprep.subr.mxu0 0.0
    %747 = vmatpush1.msra.mxu0 0.0
    %748 = vmatprep.subr.mxu0 0.0
    %749 = vmatpush1.msra.mxu0 0.0
    %750 = vmatprep.subr.mxu0 0.0
    %751 = vmatpush1.msra.mxu0 0.0
    %752 = vmatprep.subr.mxu0 0.0
    %753 = vmatpush1.msra.mxu0 0.0
    %754 = vmatprep.subr.mxu0 0.0
    %755 = vmatpush1.msra.mxu0 0.0
    %756 = vmatprep.subr.mxu0 0.0
    %757 = vmatpush1.msra.mxu0 0.0
    %758 = vmatprep.subr.mxu0 0.0
    %759 = vmatpush1.msra.mxu0 0.0
    %760 = vmatprep.subr.mxu0 0.0
    %761 = vmatpush1.msra.mxu0 0.0
    %762 = vmatprep.subr.mxu0 0.0
    %763 = vmatpush1.msra.mxu0 0.0
    %764 = vmatprep.subr.mxu0 0.0
    %765 = vmatpush1.msra.mxu0 0.0
    %766 = vmatprep.subr.mxu0 0.0
    %767 = vmatpush1.msra.mxu0 0.0
    %768 = vmatprep.subr.mxu0 0.0
    %769 = vmatpush1.msra.mxu0 0.0
    %770 = vmatprep.subr.mxu0 0.0
    %771 = vmatpush1.msra.mxu0 0.0
    %772 = vmatprep.subr.mxu0 0.0
    %773 = vmatpush1.msra.mxu0 0.0
    %774 = vmatprep.subr.mxu0 0.0
    %775 = vmatpush1.msra.mxu0 0.0
    %776 = vmatprep.subr.mxu0 0.0
    %777 = vmatpush1.msra.mxu0 0.0
    %778 = vmatprep.mubr.f32.mxu0 0.0
    %779 = vmatmul.mubr.f32.gmra.mrb[0].mxu0 %v703
    %v780 = vpop.f32.mrb[0].mxu0
    %v781 = vadd.f32 0.0, %v780
    %v782 = vpop.f32.mrb[0].mxu0
    %v783 = vadd.f32 0.0, %v782
    %784 = vmatprep.mubr.f32.mxu0 0.0
    %785 = vmatmul.mubr.f32.gmra.mrb[0].mxu0 %v706
    %v786 = vpop.f32.mrb[0].mxu0
    %v787 = vadd.f32 0.0, %v786
    %v788 = vpop.f32.mrb[0].mxu0
    %v789 = vadd.f32 0.0, %v788
    %790 = vdwg.mxu0
    %v791 = vadd.f32 %v615, %v781
    %v792 = vadd.f32 %v616, %v783
    %v793 = vadd.f32 %v617, %v787
    %v794 = vadd.f32 %v618, %v789
    %v795 = vld [vmem:[%s4] sm:$0xff]
    %v796 = vld [vmem:[%s4 + $0x8] sm:$0xff]
    %798 = vset.pattern.permute.xlu0 0
    %799 = vperm.xlu0 %798, %v795
    %v800 = vpop.permute.xlu0 %799
    %803 = vset.pattern.permute.xlu0 0
    %804 = vperm.xlu0 %803, %v796
    %v805 = vpop.permute.xlu0 %804
    %v807 = vmul.f32 %v791, %v800
    %v808 = vmul.f32 %v792, %v800
    %v809 = vmul.f32 %v793, %v805
    %v810 = vmul.f32 %v794, %v805
    %s811 = scalar_lea.vmem %s4, 16
    %v812 = vld [vmem:[%s811] sm:$0xff]
    %v813 = vld [vmem:[%s811 + $0x8] sm:$0xff]
    %815 = vset.pattern.permute.xlu0 0
    %816 = vperm.xlu0 %815, %v812
    %v817 = vpop.permute.xlu0 %816
    %820 = vset.pattern.permute.xlu0 0
    %821 = vperm.xlu0 %820, %v813
    %v822 = vpop.permute.xlu0 %821
    %v824 = vadd.f32 %v807, %v817
    %v825 = vadd.f32 %v808, %v817
    %v826 = vadd.f32 %v809, %v822
    %v827 = vadd.f32 %v810, %v822
    %v828 = vxor.u32 %v824, 2147483648
    %v829 = vxor.u32 %v825, 2147483648
    %v830 = vxor.u32 %v826, 2147483648
    %v831 = vxor.u32 %v827, 2147483648
    %v832 = vmul.f32 %v828, 1.442695
    %v833 = vpow.pop %v832
    %v834 = vmul.f32 %v829, 1.442695
    %v835 = vpow.pop %v834
    %v836 = vmul.f32 %v830, 1.442695
    %v837 = vpow.pop %v836
    %v838 = vmul.f32 %v831, 1.442695
    %v839 = vpow.pop %v838
    %v840 = vadd.f32 %v833, 1.0
    %v841 = vadd.f32 %v835, 1.0
    %v842 = vadd.f32 %v837, 1.0
    %v843 = vadd.f32 %v839, 1.0
    %v844 = vrcp.pop %v840
    %v845 = vmul.f32 1.0, %v844
    %v846 = vrcp.pop %v841
    %v847 = vmul.f32 1.0, %v846
    %v848 = vrcp.pop %v842
    %v849 = vmul.f32 1.0, %v848
    %v850 = vrcp.pop %v843
    %v851 = vmul.f32 1.0, %v850
    %v852 = vmul.f32 %v824, %v845
    %v853 = vmul.f32 %v825, %v847
    %v854 = vmul.f32 %v826, %v849
    %v855 = vmul.f32 %v827, %v851
    %856 = vst [vmem:[#allocation2] sm:$0xff] %v852
    %857 = vst [vmem:[#allocation2 + $0x8] sm:$0xff] %v853
    %858 = vst [vmem:[#allocation2 + $0x10] sm:$0xff] %v854
    %859 = vst [vmem:[#allocation2 + $0x18] sm:$0xff] %v855
    // Predicated region
    $region26: #{tpu_custom_call.1} parent=1 // pred_check
      _
    $region27: #{tpu_custom_call.1} parent=1 // pred_check_branch
      %861 = sbr.rel (0) target = $region29
    $region28: #{tpu_custom_call.1} parent=1 // pred_region
      %s863 = ssub.s32 512, 512
      %864 = vsyncadd [#allocation3], %s863
      %s865 = sshll.u32 [#allocation2], 4
      %s866 = int_to_ptr.vmem [resolvable:$true] %s865
      %871 = dma.vmem_to_hbm [thread:$0]  %s866, 512, %s6, [#allocation3], 256, 256, 16
    $region29: #{tpu_custom_call.1} parent=1 // pred_fallthru
      _
    // Predicated region
    $region30: #{tpu_custom_call.1} parent=1 // pred_check
      _
    $region31: #{tpu_custom_call.1} parent=1 // pred_check_branch
      %873 = sbr.rel (0) target = $region33
    $region32: #{tpu_custom_call.1} parent=1 // pred_region
      %874 = dma.done [#allocation3], 512
    $region33: #{tpu_custom_call.1} parent=1 // pred_fallthru
      _
    %875 = vsyncpa [#allocation3], 1

</llo_original>
